<compile_context>
chip_gen: v5e
topology: v5e:2x2
jax: 0.10.0
libtpu: 0.0.40
codegen_flags: <defaults>
</compile_context>

<pallas_src>
import functools

import jax
import jax.numpy as jnp
from jax import lax
from jax.experimental import pallas as pl
from jax.experimental.pallas import tpu as pltpu

BN_EPS = 1e-5
_VMEM_TARGET = 40 << 20   # working-set target (fits v7x 64 MiB VMEM with headroom)
_VMEM_LIMIT = 48 << 20    # scoped VMEM limit requested from Mosaic (< v7x physical)


def _round_up(x, m):
    return (x + m - 1) // m * m


# ---------------------------------------------------------------------------
# Kernels
# ---------------------------------------------------------------------------
def _partial_stats(y):
    """Build one full (8, Cp) block: row 0 = sum(y), row 1 = sum(y*y), rest 0."""
    cp = y.shape[1]
    s1 = jnp.broadcast_to(jnp.sum(y, axis=0, keepdims=True), (8, cp))
    s2 = jnp.broadcast_to(jnp.sum(y * y, axis=0, keepdims=True), (8, cp))
    rows = lax.broadcasted_iota(jnp.int32, (8, cp), 0)
    return jnp.where(rows == 0, s1, jnp.where(rows == 1, s2, 0.0))


def _stats_kernel(patches_ref, w_ref, stats_ref):
    """Pass 1 (recompute path): conv matmul for this P-tile, emit only the
    per-tile BN partial statistics (single unmasked (8, Cp) store)."""
    y = jnp.dot(patches_ref[...], w_ref[...], preferred_element_type=jnp.float32)
    stats_ref[...] = _partial_stats(y)


def _conv_y_stats_kernel(patches_ref, w_ref, y_ref, stats_ref):
    """Pass 1 (store-y path, large K): conv matmul, store y in bf16, stats are
    reduced from the f32 accumulator (so BN stats keep f32 precision)."""
    y = jnp.dot(patches_ref[...], w_ref[...], preferred_element_type=jnp.float32)
    y_ref[...] = y.astype(y_ref.dtype)
    stats_ref[...] = _partial_stats(y)


def _conv_bn_relu_kernel(patches_ref, w_ref, scale_ref, shift_ref, o_ref):
    """Pass 2 (recompute path): redo the MXU matmul and fuse BN (y*scale+shift)
    + ReLU; the f32 y never touches HBM."""
    y = jnp.dot(patches_ref[...], w_ref[...], preferred_element_type=jnp.float32)
    o_ref[...] = jnp.maximum(
        y * scale_ref[...] + shift_ref[...], 0.0).astype(o_ref.dtype)


def _bn_relu_kernel(y_ref, scale_ref, shift_ref, o_ref):
    """Pass 2 (store-y path): stream bf16 y, fused BN + ReLU."""
    y = y_ref[...].astype(jnp.float32)
    o_ref[...] = jnp.maximum(
        y * scale_ref[...] + shift_ref[...], 0.0).astype(o_ref.dtype)


# ---------------------------------------------------------------------------
# Tiling / VMEM budgeting
# ---------------------------------------------------------------------------
def _choose_tile_p(p_rows, kp, cp, tile_p):
    lane_k = max(_round_up(kp, 128), 128)   # VMEM lane-padded footprint of K

    def est(tp):
        return (2 * tp * lane_k * 2       # streamed patches tile, bf16, double-buffered
                + kp * cp * 2             # weight block (constant index_map, counted once)
                + 2 * tp * cp * 2         # bf16 y / output tile, double-buffered
                + 2 * tp * cp * 4         # f32 matmul accumulator + y*y temporary
                + 2 * 8 * cp * 4          # stats tile
                + (1 << 20))              # margin for Mosaic internal scratch

    tile_p = max(8, _round_up(tile_p, 8))
    tp = min(tile_p, _round_up(p_rows, 8))
    # >= 2 balanced tiles: lets the "parallel" grid axis shard across v7x's two
    # TensorCores and gives the BlockSpec pipeline more than one step.
    if p_rows > 8 and _round_up(p_rows, tp) // tp < 2:
        tp = _round_up(pl.cdiv(p_rows, 2), 8)
    # shrink until the double-buffered working set fits the VMEM target.
    while est(tp) > _VMEM_TARGET and tp > 256:
        tp = max(256, _round_up(tp // 2, 8))
    pp = _round_up(p_rows, tp)
    return tp, pp, pp // tp


# ---------------------------------------------------------------------------
# Fused forward
# ---------------------------------------------------------------------------
@functools.partial(jax.jit, static_argnames=(
    "kernel_size", "stride", "dilation", "padding", "tile_p",
    "compute_dtype", "out_dtype"))
def _conv1d_bn_relu(x, weight, gamma, beta, *, kernel_size, stride, dilation,
                    padding, tile_p, compute_dtype, out_dtype):
    n, t, f = x.shape
    cout = weight.shape[0]
    k = kernel_size

    # ---- 1-D unfold (strided slices only, channels-last; column order (F, k)
    # ---- matches PyTorch Conv1d weight [O, I, k] flattened as [O, I*k]).
    # TODO(synk): in-kernel im2col (per-tap matmuls + haloed DMA) to remove the
    # k/stride input duplication for large-F layers.
    xc = x.astype(compute_dtype)
    xp = jnp.pad(xc, ((0, 0), (padding, padding), (0, 0)))
    t_out = (t + 2 * padding - dilation * (k - 1) - 1) // stride + 1
    cols = [xp[:, j * dilation: j * dilation + stride * (t_out - 1) + 1: stride, :]
            for j in range(k)]                                    # each [N, T', F]
    patches = jnp.stack(cols, axis=-1).reshape(n * t_out, f * k)  # [P, K]

    p_rows, kk = patches.shape
    kp = _round_up(kk, 8)            # weight sublane dim
    cp = _round_up(cout, 128)        # lane-dense output channels
    tp, pp, n_tiles = _choose_tile_p(p_rows, kp, cp, tile_p)

    # Zero-padded rows give y == 0 (no bias in-kernel), so they contribute
    # nothing to the partial sums; we divide by the true row count below.
    patches = jnp.pad(patches, ((0, pp - p_rows), (0, kp - kk)))
    w2d = jnp.pad(weight.reshape(cout, kk).T.astype(compute_dtype),
                  ((0, kp - kk), (0, cp - cout)))                 # [Kp, Cp]

    cparams = pltpu.CompilerParams(dimension_semantics=("parallel",),
                                   vmem_limit_bytes=_VMEM_LIMIT)
    patches_spec = pl.BlockSpec((tp, kp), lambda i: (i, 0))
    w_spec = pl.BlockSpec((kp, cp), lambda i: (0, 0))
    stats_spec = pl.BlockSpec((8, cp), lambda i: (i, 0))
    row_spec = pl.BlockSpec((tp, cp), lambda i: (i, 0))
    vec_spec = pl.BlockSpec((1, cp), lambda i: (0, 0))
    stats_shape = jax.ShapeDtypeStruct((n_tiles * 8, cp), jnp.float32)

    # Recompute the conv in pass 2 when re-reading the patches is cheaper than
    # a bf16 y write + read (review rule: F*k < 2*Cout_pad).
    recompute = kp <= 2 * cp

    if recompute:
        stats = pl.pallas_call(
            _stats_kernel,
            out_shape=stats_shape,
            grid=(n_tiles,),
            in_specs=[patches_spec, w_spec],
            out_specs=stats_spec,
            compiler_params=cparams,
        )(patches, w2d)
        y_bf16 = None
    else:
        y_bf16, stats = pl.pallas_call(
            _conv_y_stats_kernel,
            out_shape=(jax.ShapeDtypeStruct((pp, cp), jnp.bfloat16), stats_shape),
            grid=(n_tiles,),
            in_specs=[patches_spec, w_spec],
            out_specs=(row_spec, stats_spec),
            compiler_params=cparams,
        )(patches, w2d)

    # ---- finalize BN batch stats over the full P axis (tiny [Cp]-sized math).
    stats = stats.reshape(n_tiles, 8, cp)
    sums = jnp.sum(stats[:, 0, :], axis=0)
    sqs = jnp.sum(stats[:, 1, :], axis=0)
    inv_p = 1.0 / p_rows
    mean = sums * inv_p
    var = jnp.maximum(sqs * inv_p - mean * mean, 0.0)   # biased var (train-mode BN)
    # TODO(synk): E[y^2]-E[y]^2 is cancellation-prone if |mean| >> std; switch to
    # a per-tile Welford merge if that regime matters for a given layer.
    gamma_p = jnp.pad(gamma, (0, cp - cout))
    beta_p = jnp.pad(beta, (0, cp - cout))
    scale = gamma_p * lax.rsqrt(var + BN_EPS)
    shift = beta_p - mean * scale
    scale2d = scale.reshape(1, cp)
    shift2d = shift.reshape(1, cp)

    out_shape = jax.ShapeDtypeStruct((pp, cp), out_dtype)
    if recompute:
        out_flat = pl.pallas_call(
            _conv_bn_relu_kernel,
            out_shape=out_shape,
            grid=(n_tiles,),
            in_specs=[patches_spec, w_spec, vec_spec, vec_spec],
            out_specs=row_spec,
            compiler_params=cparams,
        )(patches, w2d, scale2d, shift2d)
    else:
        out_flat = pl.pallas_call(
            _bn_relu_kernel,
            out_shape=out_shape,
            grid=(n_tiles,),
            in_specs=[row_spec, vec_spec, vec_spec],
            out_specs=row_spec,
            compiler_params=cparams,
        )(y_bf16, scale2d, shift2d)

    # [P_pad, Cp] -> N x T' x O (channels-last already; no transpose).
    # NOTE: when Cout is not a multiple of 128 this slice is an extra HBM copy;
    # keep production Cout lane-aligned to make it free.
    if pp != p_rows or cp != cout:
        out_flat = out_flat[:p_rows, :cout]
    return out_flat.reshape(n, t_out, cout)


class Conv1dPallas:
    """JAX/Pallas equivalent of aps.asr.base.layer.Conv1d
    (conv1d + BatchNorm1d(train-mode batch stats) + ReLU + dropout(identity))."""

    def __init__(self, inp_features, out_features, kernel_size=3, stride=2,
                 dilation=1, norm='BN', dropout=0.0, tile_p=2048,
                 compute_dtype=jnp.bfloat16, out_dtype=jnp.bfloat16,
                 key=jax.random.PRNGKey(0)):
        if norm.upper() != 'BN':
            # TODO(synk): norm='LN' (LayerNorm) variant not implemented.
            raise ValueError("only norm='BN' is implemented in this Pallas port")
        self.inp_features = inp_features
        self.out_features = out_features
        self.kernel_size = kernel_size
        self.stride = stride
        self.dilation = dilation
        self.padding = dilation * (kernel_size - 1) // 2
        self.dropout = dropout   # TODO(synk): dropout (p>0, training RNG) not modeled.
        self.tile_p = tile_p
        self.compute_dtype = compute_dtype
        self.out_dtype = out_dtype

        fan_in = inp_features * kernel_size
        bound = 1.0 / (fan_in ** 0.5)
        k_w, k_b = jax.random.split(key)
        # PyTorch Conv1d weight layout [Cout, Cin, k].
        self.weight = jax.random.uniform(
            k_w, (out_features, inp_features, kernel_size),
            minval=-bound, maxval=bound, dtype=jnp.float32)
        # Conv bias kept as a parameter but NOT used in the fused forward: a
        # per-channel constant before train-mode BN is cancelled by the mean
        # subtraction and leaves the variance unchanged (output identical).
        self.bias = jax.random.uniform(
            k_b, (out_features,), minval=-bound, maxval=bound, dtype=jnp.float32)
        # BatchNorm1d affine params (PyTorch defaults: gamma=1, beta=0).
        self.gamma = jnp.ones((out_features,), jnp.float32)
        self.beta = jnp.zeros((out_features,), jnp.float32)
        # TODO(synk): running_mean/running_var momentum updates (training-only
        # side effect that does not change the forward output) are not modeled.

    def compute_outp_dim(self, dim):
        return (dim + 2 * self.padding - self.dilation * (self.kernel_size - 1)
                - 1) // self.stride + 1

    def __call__(self, inp):
        # inp: N x T x F  ->  out: N x T' x O
        assert inp.ndim == 3 and inp.shape[-1] == self.inp_features
        return _conv1d_bn_relu(
            inp, self.weight, self.gamma, self.beta,
            kernel_size=self.kernel_size, stride=self.stride,
            dilation=self.dilation, padding=self.padding,
            tile_p=self.tile_p, compute_dtype=self.compute_dtype,
            out_dtype=self.out_dtype)


def _reference(inp, mod: Conv1dPallas):
    """Pure-JAX reference mirroring the PyTorch module (train-mode BN, with bias)."""
    cd = mod.compute_dtype
    x = jnp.transpose(inp, (0, 2, 1)).astype(cd)             # N x F x T
    w = mod.weight.astype(cd)
    y = lax.conv_general_dilated(
        x, w, window_strides=(mod.stride,),
        padding=((mod.padding, mod.padding),),
        rhs_dilation=(mod.dilation,),
        dimension_numbers=("NCH", "OIH", "NCH"),
        preferred_element_type=jnp.float32)                   # N x O x T'
    y = y + mod.bias[None, :, None]
    mean = jnp.mean(y, axis=(0, 2), keepdims=True)
    var = jnp.mean((y - mean) ** 2, axis=(0, 2), keepdims=True)
    y = (y - mean) * lax.rsqrt(var + BN_EPS)
    y = y * mod.gamma[None, :, None] + mod.beta[None, :, None]
    y = jnp.maximum(y, 0.0)
    return jnp.transpose(y, (0, 2, 1))                        # N x T' x O


if __name__ == "__main__":
    key = jax.random.PRNGKey(0)
    k1, k2, k3, k4 = jax.random.split(key, 4)

    def _check(mod, x, name):
        out = jax.block_until_ready(mod(x))
        t_exp = mod.compute_outp_dim(x.shape[1])
        assert out.shape == (x.shape[0], t_exp, mod.out_features), (name, out.shape)
        ref = _reference(x, mod)
        out_f32 = out.astype(jnp.float32)
        err = float(jnp.max(jnp.abs(out_f32 - ref)))
        assert jnp.allclose(out_f32, ref, atol=5e-2, rtol=2e-2), (name, err)

    # Config 1: small K (F*k <= 2*Cout_pad) -> pass 2 recomputes the conv;
    # no y intermediate ever written to HBM.
    n, t, f, o = 2, 300, 16, 32
    x1 = jax.random.normal(k1, (n, t, f), dtype=jnp.float32)
    mod1 = Conv1dPallas(inp_features=f, out_features=o, kernel_size=3, stride=2,
                        dilation=1, norm='BN', dropout=0.0, key=k2)
    _check(mod1, x1, "recompute-path")

    # Config 2: large K (F*k > 2*Cout_pad) -> pass 1 stores y in bf16 instead.
    n, t, f, o = 2, 120, 128, 32
    x2 = jax.random.normal(k3, (n, t, f), dtype=jnp.float32)
    mod2 = Conv1dPallas(inp_features=f, out_features=o, kernel_size=3, stride=2,
                        dilation=1, norm='BN', dropout=0.0, key=k4)
    _check(mod2, x2, "store-y-path")

    print("KERNEL_OK")
</pallas_src>

<mosaic_0001>
module attributes {stable_mosaic.version = 11 : i64} {
  func.func @_stats_kernel(%arg0: i32, %arg1: memref<152x48xbf16, #tpu.memory_space<vmem>>, %arg2: memref<48x128xbf16, #tpu.memory_space<vmem>>, %arg3: memref<8x128xf32, #tpu.memory_space<vmem>>) attributes {dimension_semantics = [#tpu.dimension_semantics<parallel>], iteration_bounds = array<i64: 2>, scalar_prefetch = 0 : i64, scratch_operands = 0 : i64, tpu.core_type = #tpu.core_type<tc>, window_params = [{transform_indices = @transform_0, window_bounds = array<i64: 152, 48>}, {pipeline_mode = #tpu.pipeline_mode<synchronous>, transform_indices = @transform_1, window_bounds = array<i64: 48, 128>}, {transform_indices = @transform_2, window_bounds = array<i64: 8, 128>}]} {
    %c0 = arith.constant 0 : index
    %c0_0 = arith.constant 0 : index
    %0 = vector.load %arg1[%c0, %c0_0] : memref<152x48xbf16, #tpu.memory_space<vmem>>, vector<152x48xbf16>
    %c0_1 = arith.constant 0 : index
    %c0_2 = arith.constant 0 : index
    %1 = vector.load %arg2[%c0_1, %c0_2] : memref<48x128xbf16, #tpu.memory_space<vmem>>, vector<48x128xbf16>
    %cst = arith.constant dense<0.000000e+00> : vector<152x128xf32>
    %2 = tpu.matmul %0, %1, %cst {dimension_numbers = #tpu.dot_dimension_numbers<[1], [0], [0], [1], [0, 0, 1, 1], [], []>} : vector<152x48xbf16>, vector<48x128xbf16>, vector<152x128xf32> -> vector<152x128xf32>
    %cst_3 = arith.constant dense<0.000000e+00> : vector<128xf32>
    %3 = vector.multi_reduction <add>, %2, %cst_3 [0] : vector<152x128xf32> to vector<128xf32>
    %4 = vector.shape_cast %3 : vector<128xf32> to vector<1x128xf32>
    %5 = vector.shape_cast %4 : vector<1x128xf32> to vector<1x128xf32>
    %6 = vector.broadcast %5 : vector<1x128xf32> to vector<8x128xf32>
    %7 = arith.mulf %2, %2 : vector<152x128xf32>
    %cst_4 = arith.constant dense<0.000000e+00> : vector<128xf32>
    %8 = vector.multi_reduction <add>, %7, %cst_4 [0] : vector<152x128xf32> to vector<128xf32>
    %9 = vector.shape_cast %8 : vector<128xf32> to vector<1x128xf32>
    %10 = vector.shape_cast %9 : vector<1x128xf32> to vector<1x128xf32>
    %11 = vector.broadcast %10 : vector<1x128xf32> to vector<8x128xf32>
    %12 = tpu.iota {dimensions = array<i32: 0>} : vector<8x128xi32>
    %c0_i32 = arith.constant 0 : i32
    %13 = vector.broadcast %c0_i32 : i32 to vector<8x128xi32>
    %14 = arith.cmpi eq, %12, %13 : vector<8x128xi32>
    %c1_i32 = arith.constant 1 : i32
    %15 = vector.broadcast %c1_i32 : i32 to vector<8x128xi32>
    %16 = arith.cmpi eq, %12, %15 : vector<8x128xi32>
    %cst_5 = arith.constant 0.000000e+00 : f32
    %17 = vector.broadcast %cst_5 : f32 to vector<8x128xf32>
    %18 = arith.select %16, %11, %17 : vector<8x128xi1>, vector<8x128xf32>
    %19 = arith.select %14, %6, %18 : vector<8x128xi1>, vector<8x128xf32>
    %c0_6 = arith.constant 0 : index
    %c0_7 = arith.constant 0 : index
    %20 = vector.load %arg3[%c0_6, %c0_7] : memref<8x128xf32, #tpu.memory_space<vmem>>, vector<8x128xf32>
    tpu.vector_store %arg3[%c0_6, %c0_7], %19 {strides = array<i32>} : memref<8x128xf32, #tpu.memory_space<vmem>>, vector<8x128xf32>,
    return
  }
  func.func @transform_0(%arg0: i32) -> (i32, i32) {
    %c0_i32 = arith.constant 0 : i32
    %c0_i32_0 = arith.constant 0 : i32
    return %arg0, %c0_i32 : i32, i32
  }
  func.func @transform_1(%arg0: i32) -> (i32, i32) {
    %c0_i32 = arith.constant 0 : i32
    %c0_i32_0 = arith.constant 0 : i32
    %c0_i32_1 = arith.constant 0 : i32
    return %c0_i32, %c0_i32_0 : i32, i32
  }
  func.func @transform_2(%arg0: i32) -> (i32, i32) {
    %c0_i32 = arith.constant 0 : i32
    %c0_i32_0 = arith.constant 0 : i32
    return %arg0, %c0_i32 : i32, i32
  }
}

module attributes {stable_mosaic.version = 11 : i64} {
  func.func @_conv_bn_relu_kernel(%arg0: i32, %arg1: memref<152x48xbf16, #tpu.memory_space<vmem>>, %arg2: memref<48x128xbf16, #tpu.memory_space<vmem>>, %arg3: memref<1x128xf32, #tpu.memory_space<vmem>>, %arg4: memref<1x128xf32, #tpu.memory_space<vmem>>, %arg5: memref<152x128xbf16, #tpu.memory_space<vmem>>) attributes {dimension_semantics = [#tpu.dimension_semantics<parallel>], iteration_bounds = array<i64: 2>, scalar_prefetch = 0 : i64, scratch_operands = 0 : i64, tpu.core_type = #tpu.core_type<tc>, window_params = [{transform_indices = @transform_0, window_bounds = array<i64: 152, 48>}, {pipeline_mode = #tpu.pipeline_mode<synchronous>, transform_indices = @transform_1, window_bounds = array<i64: 48, 128>}, {pipeline_mode = #tpu.pipeline_mode<synchronous>, transform_indices = @transform_2, window_bounds = array<i64: 1, 128>}, {pipeline_mode = #tpu.pipeline_mode<synchronous>, transform_indices = @transform_3, window_bounds = array<i64: 1, 128>}, {transform_indices = @transform_4, window_bounds = array<i64: 152, 128>}]} {
    %c0 = arith.constant 0 : index
    %c0_0 = arith.constant 0 : index
    %0 = vector.load %arg1[%c0, %c0_0] : memref<152x48xbf16, #tpu.memory_space<vmem>>, vector<152x48xbf16>
    %c0_1 = arith.constant 0 : index
    %c0_2 = arith.constant 0 : index
    %1 = vector.load %arg2[%c0_1, %c0_2] : memref<48x128xbf16, #tpu.memory_space<vmem>>, vector<48x128xbf16>
    %cst = arith.constant dense<0.000000e+00> : vector<152x128xf32>
    %2 = tpu.matmul %0, %1, %cst {dimension_numbers = #tpu.dot_dimension_numbers<[1], [0], [0], [1], [0, 0, 1, 1], [], []>} : vector<152x48xbf16>, vector<48x128xbf16>, vector<152x128xf32> -> vector<152x128xf32>
    %c0_3 = arith.constant 0 : index
    %c0_4 = arith.constant 0 : index
    %3 = vector.load %arg3[%c0_3, %c0_4] : memref<1x128xf32, #tpu.memory_space<vmem>>, vector<1x128xf32>
    %4 = vector.broadcast %3 : vector<1x128xf32> to vector<152x128xf32>
    %5 = arith.mulf %2, %4 : vector<152x128xf32>
    %c0_5 = arith.constant 0 : index
    %c0_6 = arith.constant 0 : index
    %6 = vector.load %arg4[%c0_5, %c0_6] : memref<1x128xf32, #tpu.memory_space<vmem>>, vector<1x128xf32>
    %7 = vector.broadcast %6 : vector<1x128xf32> to vector<152x128xf32>
    %8 = arith.addf %5, %7 : vector<152x128xf32>
    %cst_7 = arith.constant 0.000000e+00 : f32
    %9 = vector.broadcast %cst_7 : f32 to vector<152x128xf32>
    %10 = arith.maximumf %8, %9 : vector<152x128xf32>
    %11 = arith.truncf %10 : vector<152x128xf32> to vector<152x128xbf16>
    %c0_8 = arith.constant 0 : index
    %c0_9 = arith.constant 0 : index
    %12 = vector.load %arg5[%c0_8, %c0_9] : memref<152x128xbf16, #tpu.memory_space<vmem>>, vector<152x128xbf16>
    tpu.vector_store %arg5[%c0_8, %c0_9], %11 {strides = array<i32>} : memref<152x128xbf16, #tpu.memory_space<vmem>>, vector<152x128xbf16>,
    return
  }
  func.func @transform_0(%arg0: i32) -> (i32, i32) {
    %c0_i32 = arith.constant 0 : i32
    %c0_i32_0 = arith.constant 0 : i32
    return %arg0, %c0_i32 : i32, i32
  }
  func.func @transform_1(%arg0: i32) -> (i32, i32) {
    %c0_i32 = arith.constant 0 : i32
    %c0_i32_0 = arith.constant 0 : i32
    %c0_i32_1 = arith.constant 0 : i32
    return %c0_i32, %c0_i32_0 : i32, i32
  }
  func.func @transform_2(%arg0: i32) -> (i32, i32) {
    %c0_i32 = arith.constant 0 : i32
    %c0_i32_0 = arith.constant 0 : i32
    %c0_i32_1 = arith.constant 0 : i32
    return %c0_i32, %c0_i32_0 : i32, i32
  }
  func.func @transform_3(%arg0: i32) -> (i32, i32) {
    %c0_i32 = arith.constant 0 : i32
    %c0_i32_0 = arith.constant 0 : i32
    %c0_i32_1 = arith.constant 0 : i32
    return %c0_i32, %c0_i32_0 : i32, i32
  }
  func.func @transform_4(%arg0: i32) -> (i32, i32) {
    %c0_i32 = arith.constant 0 : i32
    %c0_i32_0 = arith.constant 0 : i32
    return %arg0, %c0_i32 : i32, i32
  }
}

</mosaic_0001>

<llo_original>
// kernel: _conv1d_bn_relu.2
$region0: #{_conv1d_bn_relu.2}
  #allocation0 [shape = 'u32[]', space=smem, size = 0x4, offset = 0x4, fixed_abs, tag = 'smem constant byte address 0x4 - core index']
  #allocation1 [shape = 'u32[72,128]{1,0:T(1,128)}', space=vmem, size = 0x9000, scoped, tag = 'internal scratch']
  %s0 = inlined_call_operand.vmem [shape: bf16[304,48], index: 0, kind: input, shape index: {}]
  %s1 = inlined_call_operand.vmem [shape: bf16[48,128], index: 1, kind: input, shape index: {}]
  %s2 = inlined_call_operand.vmem [shape: f32[16,128], index: 2, kind: output, shape index: {}]
  %s3 = sld [smem:[#allocation0]]
  $region41: #{_conv1d_bn_relu.2} parent=0
    _
  %s5 = ssub.s32 1, %s3
  %s6 = scalar_select 0, %s5, %s3
  loop: start=0, step=1, limit=4
  $region2: #{_conv1d_bn_relu.2} parent=0 // loop_pre_header
    _
  $region3: #{_conv1d_bn_relu.2} parent=0 // loop_header
    %s8 = sphi 0, %s12
    %p9 = scmp.ge.s32.totalorder %s8, 4
    %s18 = sphi 0, %s20
    %s21 = sphi 0, %s18
    %s22 = sphi 0, %s21
    %s38 = sphi 0, %s22
    %s42 = sphi 0, %s42
    %s44 = sphi 0, %s42
    %s45 = sphi 0, %s44
    %s59 = sphi 0, %s45
    %s65 = sphi 0, %s67
    %s68 = sphi 0, %s65
    %s69 = sphi 0, %s68
    %s85 = sphi 0, %s69
  $region4: #{_conv1d_bn_relu.2} parent=0 // loop_header_branch
    %11 = sbr.rel (%p9) target = $region8
  $region5: #{_conv1d_bn_relu.2} parent=0 // loop_body
    %s13 = ssub.s32 %s8, 1
    %s14 = ssub.s32 %s8, 2
    %s15 = sadd.s32 %s8, 1
    %s16 = ssub.s32 %s8, %s15
    %p17 = scmp.eq.s32.totalorder %s16, 0
    %s19 = sadd.s32 %s18, 1
    %s20 = scalar_select %p17, %s18, %s19
    %p23 = pneg %p17
    %p24 = scmp.eq.s32.totalorder %s8, 1
    %p25 = por %p23, %p24
    %p26 = scmp.ne.s32.totalorder %s18, %s21
    %p27 = scmp.eq.s32.totalorder %s8, 0
    %p28 = por %p26, %p27
    %p29 = scmp.ne.s32.totalorder %s18, %s21
    %p30 = scmp.eq.s32.totalorder %s13, 1
    %p31 = por %p29, %p30
    %p32 = scmp.ne.s32.totalorder %s21, %s22
    %p33 = scmp.eq.s32.totalorder %s13, 0
    %p34 = por %p32, %p33
    %p35 = scmp.ne.s32.totalorder %s21, %s22
    %p36 = scmp.eq.s32.totalorder %s14, 1
    %p37 = por %p35, %p36
    %p39 = scmp.ne.s32.totalorder %s22, %s38
    %p40 = scmp.eq.s32.totalorder %s14, 0
    %p41 = por %p39, %p40
    %s43 = sadd.s32 %s42, 1
    %p46 = scmp.eq.s32.totalorder %s8, 1
    %p47 = scmp.ne.s32.totalorder %s42, %s44
    %p48 = scmp.eq.s32.totalorder %s8, 0
    %p49 = por %p47, %p48
    %p50 = scmp.ne.s32.totalorder %s42, %s44
    %p51 = scmp.eq.s32.totalorder %s13, 1
    %p52 = por %p50, %p51
    %p53 = scmp.ne.s32.totalorder %s44, %s45
    %p54 = scmp.eq.s32.totalorder %s13, 0
    %p55 = por %p53, %p54
    %p56 = scmp.ne.s32.totalorder %s44, %s45
    %p57 = scmp.eq.s32.totalorder %s14, 1
    %p58 = por %p56, %p57
    %p60 = scmp.ne.s32.totalorder %s45, %s59
    %p61 = scmp.eq.s32.totalorder %s14, 0
    %p62 = por %p60, %p61
    %s63 = ssub.s32 %s8, %s15
    %p64 = scmp.eq.s32.totalorder %s63, 0
    %s66 = sadd.s32 %s65, 1
    %s67 = scalar_select %p64, %s65, %s66
    %p70 = pneg %p64
    %p71 = scmp.eq.s32.totalorder %s8, 1
    %p72 = por %p70, %p71
    %p73 = scmp.ne.s32.totalorder %s65, %s68
    %p74 = scmp.eq.s32.totalorder %s8, 0
    %p75 = por %p73, %p74
    %p76 = scmp.ne.s32.totalorder %s65, %s68
    %p77 = scmp.eq.s32.totalorder %s13, 1
    %p78 = por %p76, %p77
    %p79 = scmp.ne.s32.totalorder %s68, %s69
    %p80 = scmp.eq.s32.totalorder %s13, 0
    %p81 = por %p79, %p80
    %p82 = scmp.ne.s32.totalorder %s68, %s69
    %p83 = scmp.eq.s32.totalorder %s14, 1
    %p84 = por %p82, %p83
    %p86 = scmp.ne.s32.totalorder %s69, %s85
    %p87 = scmp.eq.s32.totalorder %s14, 0
    %p88 = por %p86, %p87
    %p89 = scmp.le.s32.totalorder 1, %s8
    %p90 = scmp.lt.s32.totalorder %s8, 3
    %p91 = pnand %p89, %p90
    %p92 = pneg %p91
    // Predicated region
    $region9: #{_conv1d_bn_relu.2} parent=5 // pred_check
      _
    $region10: #{_conv1d_bn_relu.2} parent=5 // pred_check_branch
      %94 = sbr.rel (%p91) target = $region12
    $region11: #{_conv1d_bn_relu.2} parent=5 // pred_region
      %s95 = ssub.s32 %s8, 1
      // Predicated region
      $region13: #{_conv1d_bn_relu.2} parent=11 // pred_check
        %p96 = pneg %p55
      $region14: #{_conv1d_bn_relu.2} parent=11 // pred_check_branch
        %98 = sbr.rel (%p96) target = $region16
      $region15: #{_conv1d_bn_relu.2} parent=11 // pred_region
        _
      $region16: #{_conv1d_bn_relu.2} parent=11 // pred_fallthru
        _
    $region12: #{_conv1d_bn_relu.2} parent=5 // pred_fallthru
      _
    %p99 = scmp.lt.s32.totalorder %s8, 2
    // Predicated region
    $region17: #{_conv1d_bn_relu.2} parent=5 // pred_check
      %p100 = pneg %p99
    $region18: #{_conv1d_bn_relu.2} parent=5 // pred_check_branch
      %102 = sbr.rel (%p100) target = $region20
    $region19: #{_conv1d_bn_relu.2} parent=5 // pred_region
      // Predicated region
      $region21: #{_conv1d_bn_relu.2} parent=19 // pred_check
        %p103 = pneg %p28
      $region22: #{_conv1d_bn_relu.2} parent=19 // pred_check_branch
        %105 = sbr.rel (%p103) target = $region24
      $region23: #{_conv1d_bn_relu.2} parent=19 // pred_region
        %s106 = smul.u32 19, %s8
        %p107 = scmp.lt.s32.totalorder %s106, 37
        %s108 = scalar_select %p107, %s106, 37
        %s109 = smul.addr %s108, 4
        %s110 = scalar_lea.vmem %s0, %s109
        %s111 = smul.u32 19, %s8
      $region24: #{_conv1d_bn_relu.2} parent=19 // pred_fallthru
        _
    $region20: #{_conv1d_bn_relu.2} parent=5 // pred_fallthru
      _
    %p112 = scmp.le.s32.totalorder 1, %s8
    %p113 = scmp.lt.s32.totalorder %s8, 3
    %p114 = pnand %p112, %p113
    %p115 = pneg %p114
    // Predicated region
    $region25: #{_conv1d_bn_relu.2} parent=5 // pred_check
      _
    $region26: #{_conv1d_bn_relu.2} parent=5 // pred_check_branch
      %117 = sbr.rel (%p114) target = $region28
    $region27: #{_conv1d_bn_relu.2} parent=5 // pred_region
      %s118 = ssub.s32 %s8, 1
      %s119 = smul.u32 19, %s13
      %p120 = scmp.lt.s32.totalorder %s119, 37
      %s121 = scalar_select %p120, %s119, 37
      %s122 = smul.addr %s121, 4
      %s123 = scalar_lea.vmem %s0, %s122
      %p124 = pneg %p34
      %p125 = pneg %p31
      %p126 = pneg %p55
      %p127 = pneg %p52
      %p128 = pneg %p81
      %p129 = pneg %p78
      %p130 = scmp.lt.s32.totalorder %s13, 1
      %s131 = scalar_select %p130, %s13, 1
      %s132 = smul.addr %s131, 8
      %s133 = scalar_lea.vmem %s2, %s132
      %s134 = smul.u32 19, %s13
      %p135 = scmp.lt.s32.totalorder %s134, 37
      %s136 = scalar_select %p135, %s134, 37
      %s137 = smul.addr %s136, 4
      %s138 = scalar_lea.vmem %s0, %s137
      %s139 = smul.u32 19, %s13
      %p140 = scmp.lt.s32.totalorder %s13, 1
      %s141 = scalar_select %p140, %s13, 1
      %s142 = smul.addr %s141, 8
      %s143 = scalar_lea.vmem %s2, %s142
      %v145 = vld [vmem:[%s138] sm:$0xf]
      %v146 = vld [vmem:[%s138 + $0x4] sm:$0xf]
      %v147 = vld [vmem:[%s138 + $0x8] sm:$0xf]
      %v148 = vld [vmem:[%s138 + $0xc] sm:$0xf]
      %v149 = vld [vmem:[%s138 + $0x10] sm:$0xf]
      %v150 = vld [vmem:[%s138 + $0x14] sm:$0xf]
      %v151 = vld [vmem:[%s138 + $0x18] sm:$0xf]
      %v152 = vld [vmem:[%s138 + $0x1c] sm:$0xf]
      %v153 = vld [vmem:[%s138 + $0x20] sm:$0xf]
      %v154 = vld [vmem:[%s138 + $0x24] sm:$0xf]
      %v155 = vld [vmem:[%s138 + $0x28] sm:$0xf]
      %v156 = vld [vmem:[%s138 + $0x2c] sm:$0xf]
      %v157 = vld [vmem:[%s138 + $0x30] sm:$0xf]
      %v158 = vld [vmem:[%s138 + $0x34] sm:$0xf]
      %v159 = vld [vmem:[%s138 + $0x38] sm:$0xf]
      %v160 = vld [vmem:[%s138 + $0x3c] sm:$0xf]
      %v161 = vld [vmem:[%s138 + $0x40] sm:$0xf]
      %v162 = vld [vmem:[%s138 + $0x44] sm:$0xf]
      %v163 = vld [vmem:[%s138 + $0x48] sm:$0xf]
      %v164 = vld [vmem:[%s1] sm:$0xf]
      %v165 = vld [vmem:[%s1 + $0x4] sm:$0xf]
      %v166 = vld [vmem:[%s1 + $0x8] sm:$0xf]
      %v167 = vld [vmem:[%s1 + $0xc] sm:$0xf]
      %v168 = vld [vmem:[%s1 + $0x10] sm:$0xf]
      %v169 = vld [vmem:[%s1 + $0x14] sm:$0xf]
      %v189 = vunpack.c.l.b16 %v145
      %v190 = vunpack.c.l.b16 %v146
      %v191 = vunpack.c.l.b16 %v147
      %v192 = vunpack.c.l.b16 %v148
      %v193 = vunpack.c.l.b16 %v149
      %v194 = vunpack.c.l.b16 %v150
      %v195 = vunpack.c.l.b16 %v151
      %v196 = vunpack.c.l.b16 %v152
      %v197 = vunpack.c.l.b16 %v153
      %v198 = vunpack.c.l.b16 %v154
      %v199 = vunpack.c.l.b16 %v155
      %v200 = vunpack.c.l.b16 %v156
      %v201 = vunpack.c.l.b16 %v157
      %v202 = vunpack.c.l.b16 %v158
      %v203 = vunpack.c.l.b16 %v159
      %v204 = vunpack.c.l.b16 %v160
      %v205 = vunpack.c.l.b16 %v161
      %v206 = vunpack.c.l.b16 %v162
      %v207 = vunpack.c.l.b16 %v163
      %v208 = vpack.c.b16 %v190, %v189
      %v209 = vpack.c.b16 %v192, %v191
      %v210 = vpack.c.b16 %v194, %v193
      %v211 = vpack.c.b16 %v196, %v195
      %v212 = vpack.c.b16 %v198, %v197
      %v213 = vpack.c.b16 %v200, %v199
      %v214 = vpack.c.b16 %v202, %v201
      %v215 = vpack.c.b16 %v204, %v203
      %v216 = vpack.c.b16 %v206, %v205
      %v217 = vpack.c.b16 %v207, %v207
      %v224 = vunpack.c.l.b16 %v164
      %v225 = vunpack.c.l.b16 %v165
      %v226 = vunpack.c.l.b16 %v166
      %v227 = vunpack.c.l.b16 %v167
      %v228 = vunpack.c.l.b16 %v168
      %v229 = vunpack.c.l.b16 %v169
      %v230 = vpack.c.b16 %v225, %v224
      %v231 = vpack.c.b16 %v227, %v226
      %v232 = vpack.c.b16 %v229, %v228
      %vm236 = vcmask 392192
      %v238 = vsel %vm236, %v208, 0
      %v241 = vsel %vm236, %v209, 0
      %v244 = vsel %vm236, %v210, 0
      %v247 = vsel %vm236, %v211, 0
      %v250 = vsel %vm236, %v212, 0
      %v253 = vsel %vm236, %v213, 0
      %v256 = vsel %vm236, %v214, 0
      %v259 = vsel %vm236, %v215, 0
      %v262 = vsel %vm236, %v216, 0
      %v265 = vsel %vm236, %v217, 0
      %267 = vmatpush.bf16.msra.mxu0 0
      %268 = vmatpush.bf16.msra.mxu0 0
      %269 = vmatpush.bf16.msra.mxu0 0
      %270 = vmatpush.bf16.msra.mxu0 0
      %271 = vmatpush.bf16.msra.mxu0 0
      %272 = vmatpush.bf16.msra.mxu0 %v232
      %273 = vmatpush.bf16.msra.mxu0 %v231
      %274 = vmatpush.bf16.msra.mxu0 %v230
      %275 = vmatmul.bf16.gmra.mxu0 %v238
      %v276 = vpop.f32.mrf.mxu0
      %v277 = vadd.f32 0.0, %v276
      %v278 = vpop.f32.mrf.mxu0
      %v279 = vadd.f32 0.0, %v278
      %280 = vmatmul.bf16.gmra.mxu0 %v241
      %v281 = vpop.f32.mrf.mxu0
      %v282 = vadd.f32 0.0, %v281
      %v283 = vpop.f32.mrf.mxu0
      %v284 = vadd.f32 0.0, %v283
      %285 = vmatmul.bf16.gmra.mxu0 %v244
      %v286 = vpop.f32.mrf.mxu0
      %v287 = vadd.f32 0.0, %v286
      %v288 = vpop.f32.mrf.mxu0
      %v289 = vadd.f32 0.0, %v288
      %290 = vmatmul.bf16.gmra.mxu0 %v247
      %v291 = vpop.f32.mrf.mxu0
      %v292 = vadd.f32 0.0, %v291
      %v293 = vpop.f32.mrf.mxu0
      %v294 = vadd.f32 0.0, %v293
      %295 = vmatmul.bf16.gmra.mxu0 %v250
      %v296 = vpop.f32.mrf.mxu0
      %v297 = vadd.f32 0.0, %v296
      %v298 = vpop.f32.mrf.mxu0
      %v299 = vadd.f32 0.0, %v298
      %300 = vmatmul.bf16.gmra.mxu0 %v253
      %v301 = vpop.f32.mrf.mxu0
      %v302 = vadd.f32 0.0, %v301
      %v303 = vpop.f32.mrf.mxu0
      %v304 = vadd.f32 0.0, %v303
      %305 = vmatmul.bf16.gmra.mxu0 %v256
      %v306 = vpop.f32.mrf.mxu0
      %v307 = vadd.f32 0.0, %v306
      %v308 = vpop.f32.mrf.mxu0
      %v309 = vadd.f32 0.0, %v308
      %310 = vmatmul.bf16.gmra.mxu0 %v259
      %v311 = vpop.f32.mrf.mxu0
      %v312 = vadd.f32 0.0, %v311
      %v313 = vpop.f32.mrf.mxu0
      %v314 = vadd.f32 0.0, %v313
      %315 = vmatmul.bf16.gmra.mxu0 %v262
      %v316 = vpop.f32.mrf.mxu0
      %v317 = vadd.f32 0.0, %v316
      %v318 = vpop.f32.mrf.mxu0
      %v319 = vadd.f32 0.0, %v318
      %320 = vmatmul.bf16.gmra.mxu0 %v265
      %v321 = vpop.f32.mrf.mxu0
      %v322 = vadd.f32 0.0, %v321
      %v323 = vpop.f32.mrf.mxu0
      %324 = vdwg.mxu0
      %v325 = vadd.f32 %v277, %v279
      %v326 = vadd.f32 %v325, %v282
      %v327 = vadd.f32 %v326, %v284
      %v328 = vadd.f32 %v327, %v287
      %v329 = vadd.f32 %v328, %v289
      %v330 = vadd.f32 %v329, %v292
      %v331 = vadd.f32 %v330, %v294
      %v332 = vadd.f32 %v331, %v297
      %v333 = vadd.f32 %v332, %v299
      %v334 = vadd.f32 %v333, %v302
      %v335 = vadd.f32 %v334, %v304
      %v336 = vadd.f32 %v335, %v307
      %v337 = vadd.f32 %v336, %v309
      %v338 = vadd.f32 %v337, %v312
      %v339 = vadd.f32 %v338, %v314
      %v340 = vadd.f32 %v339, %v317
      %v341 = vadd.f32 %v340, %v319
      %v342 = vadd.f32 %v341, %v322
      %v343 = vrot.slane %v342, 4
      %v344 = vadd.f32 %v342, %v343
      %v345 = vrot.slane %v344, 2
      %v346 = vadd.f32 %v344, %v345
      %v347 = vrot.slane %v346, 1
      %v348 = vadd.f32 %v346, %v347
      %v349 = vmul.f32 %v277, %v277
      %v350 = vmul.f32 %v279, %v279
      %v351 = vmul.f32 %v282, %v282
      %v352 = vmul.f32 %v284, %v284
      %v353 = vmul.f32 %v287, %v287
      %v354 = vmul.f32 %v289, %v289
      %v355 = vmul.f32 %v292, %v292
      %v356 = vmul.f32 %v294, %v294
      %v357 = vmul.f32 %v297, %v297
      %v358 = vmul.f32 %v299, %v299
      %v359 = vmul.f32 %v302, %v302
      %v360 = vmul.f32 %v304, %v304
      %v361 = vmul.f32 %v307, %v307
      %v362 = vmul.f32 %v309, %v309
      %v363 = vmul.f32 %v312, %v312
      %v364 = vmul.f32 %v314, %v314
      %v365 = vmul.f32 %v317, %v317
      %v366 = vmul.f32 %v319, %v319
      %v367 = vmul.f32 %v322, %v322
      %v368 = vadd.f32 %v349, %v350
      %v369 = vadd.f32 %v368, %v351
      %v370 = vadd.f32 %v369, %v352
      %v371 = vadd.f32 %v370, %v353
      %v372 = vadd.f32 %v371, %v354
      %v373 = vadd.f32 %v372, %v355
      %v374 = vadd.f32 %v373, %v356
      %v375 = vadd.f32 %v374, %v357
      %v376 = vadd.f32 %v375, %v358
      %v377 = vadd.f32 %v376, %v359
      %v378 = vadd.f32 %v377, %v360
      %v379 = vadd.f32 %v378, %v361
      %v380 = vadd.f32 %v379, %v362
      %v381 = vadd.f32 %v380, %v363
      %v382 = vadd.f32 %v381, %v364
      %v383 = vadd.f32 %v382, %v365
      %v384 = vadd.f32 %v383, %v366
      %v385 = vadd.f32 %v384, %v367
      %v386 = vrot.slane %v385, 4
      %v387 = vadd.f32 %v385, %v386
      %v388 = vrot.slane %v387, 2
      %v389 = vadd.f32 %v387, %v388
      %v390 = vrot.slane %v389, 1
      %v391 = vadd.f32 %v389, %v390
      %v392 = vlaneseq
      %v393 = vshrl.u32 %v392, 7
      %vm394 = vcmp.eq.s32.totalorder %v393, 0
      %vm395 = vcmp.eq.s32.totalorder %v393, 1
      %v396 = vsel %vm395, %v391, 0.0
      %v397 = vsel %vm394, %v348, %v396
      %398 = vst [vmem:[%s143] sm:$0xff] %v397
      %p399 = scmp.lt.s32.totalorder %s13, 1
      %s400 = scalar_select %p399, %s13, 1
      %s401 = smul.addr %s400, 8
      %s402 = scalar_lea.vmem %s2, %s401
      // Predicated region
      $region29: #{_conv1d_bn_relu.2} parent=27 // pred_check
        %p403 = pneg %p78
      $region30: #{_conv1d_bn_relu.2} parent=27 // pred_check_branch
        %405 = sbr.rel (%p403) target = $region32
      $region31: #{_conv1d_bn_relu.2} parent=27 // pred_region
        _
      $region32: #{_conv1d_bn_relu.2} parent=27 // pred_fallthru
        _
    $region28: #{_conv1d_bn_relu.2} parent=5 // pred_fallthru
      _
    %p406 = scmp.le.s32.totalorder 2, %s8
    // Predicated region
    $region33: #{_conv1d_bn_relu.2} parent=5 // pred_check
      %p407 = pneg %p406
    $region34: #{_conv1d_bn_relu.2} parent=5 // pred_check_branch
      %409 = sbr.rel (%p407) target = $region36
    $region35: #{_conv1d_bn_relu.2} parent=5 // pred_region
      %s410 = ssub.s32 %s8, 2
      // Predicated region
      $region37: #{_conv1d_bn_relu.2} parent=35 // pred_check
        %p411 = pneg %p84
      $region38: #{_conv1d_bn_relu.2} parent=35 // pred_check_branch
        %413 = sbr.rel (%p411) target = $region40
      $region39: #{_conv1d_bn_relu.2} parent=35 // pred_region
        %p414 = scmp.lt.s32.totalorder %s14, 1
        %s415 = scalar_select %p414, %s14, 1
        %s416 = smul.addr %s415, 8
        %s417 = scalar_lea.vmem %s2, %s416
      $region40: #{_conv1d_bn_relu.2} parent=35 // pred_fallthru
        _
    $region36: #{_conv1d_bn_relu.2} parent=5 // pred_fallthru
      _
  $region6: #{_conv1d_bn_relu.2} parent=0 // loop_footer
    %s12 = sadd.s32 1, %s8
  $region7: #{_conv1d_bn_relu.2} parent=0 // loop_footer_branch
    %7 = sbr.rel target = $region3
  $region8: #{_conv1d_bn_relu.2} parent=0 // loop_exit
    _

// kernel: _conv1d_bn_relu.3
$region0: #{_conv1d_bn_relu.3}
  #allocation0 [shape = 'u32[]', space=smem, size = 0x4, offset = 0x4, fixed_abs, tag = 'smem constant byte address 0x4 - core index']
  #allocation1 [shape = 'u32[72,128]{1,0:T(1,128)}', space=vmem, size = 0x9000, scoped, tag = 'internal scratch']
  %s0 = inlined_call_operand.vmem [shape: bf16[304,48], index: 0, kind: input, shape index: {}]
  %s1 = inlined_call_operand.vmem [shape: bf16[48,128], index: 1, kind: input, shape index: {}]
  %s2 = inlined_call_operand.vmem [shape: f32[1,128], index: 2, kind: input, shape index: {}]
  %s3 = inlined_call_operand.vmem [shape: f32[1,128], index: 3, kind: input, shape index: {}]
  %s4 = inlined_call_operand.vmem [shape: bf16[304,128], index: 4, kind: output, shape index: {}]
  %s5 = sld [smem:[#allocation0]]
  $region49: #{_conv1d_bn_relu.3} parent=0
    _
  %s7 = ssub.s32 1, %s5
  %s8 = scalar_select 0, %s7, %s5
  loop: start=0, step=1, limit=4
  $region2: #{_conv1d_bn_relu.3} parent=0 // loop_pre_header
    _
  $region3: #{_conv1d_bn_relu.3} parent=0 // loop_header
    %s10 = sphi 0, %s14
    %p11 = scmp.ge.s32.totalorder %s10, 4
    %s20 = sphi 0, %s22
    %s23 = sphi 0, %s20
    %s24 = sphi 0, %s23
    %s40 = sphi 0, %s24
    %s44 = sphi 0, %s44
    %s46 = sphi 0, %s44
    %s47 = sphi 0, %s46
    %s61 = sphi 0, %s47
    %s65 = sphi 0, %s65
    %s67 = sphi 0, %s65
    %s68 = sphi 0, %s67
    %s82 = sphi 0, %s68
    %s86 = sphi 0, %s86
    %s88 = sphi 0, %s86
    %s89 = sphi 0, %s88
    %s103 = sphi 0, %s89
    %s109 = sphi 0, %s111
    %s112 = sphi 0, %s109
    %s113 = sphi 0, %s112
    %s129 = sphi 0, %s113
  $region4: #{_conv1d_bn_relu.3} parent=0 // loop_header_branch
    %13 = sbr.rel (%p11) target = $region8
  $region5: #{_conv1d_bn_relu.3} parent=0 // loop_body
    %s15 = ssub.s32 %s10, 1
    %s16 = ssub.s32 %s10, 2
    %s17 = sadd.s32 %s10, 1
    %s18 = ssub.s32 %s10, %s17
    %p19 = scmp.eq.s32.totalorder %s18, 0
    %s21 = sadd.s32 %s20, 1
    %s22 = scalar_select %p19, %s20, %s21
    %p25 = pneg %p19
    %p26 = scmp.eq.s32.totalorder %s10, 1
    %p27 = por %p25, %p26
    %p28 = scmp.ne.s32.totalorder %s20, %s23
    %p29 = scmp.eq.s32.totalorder %s10, 0
    %p30 = por %p28, %p29
    %p31 = scmp.ne.s32.totalorder %s20, %s23
    %p32 = scmp.eq.s32.totalorder %s15, 1
    %p33 = por %p31, %p32
    %p34 = scmp.ne.s32.totalorder %s23, %s24
    %p35 = scmp.eq.s32.totalorder %s15, 0
    %p36 = por %p34, %p35
    %p37 = scmp.ne.s32.totalorder %s23, %s24
    %p38 = scmp.eq.s32.totalorder %s16, 1
    %p39 = por %p37, %p38
    %p41 = scmp.ne.s32.totalorder %s24, %s40
    %p42 = scmp.eq.s32.totalorder %s16, 0
    %p43 = por %p41, %p42
    %s45 = sadd.s32 %s44, 1
    %p48 = scmp.eq.s32.totalorder %s10, 1
    %p49 = scmp.ne.s32.totalorder %s44, %s46
    %p50 = scmp.eq.s32.totalorder %s10, 0
    %p51 = por %p49, %p50
    %p52 = scmp.ne.s32.totalorder %s44, %s46
    %p53 = scmp.eq.s32.totalorder %s15, 1
    %p54 = por %p52, %p53
    %p55 = scmp.ne.s32.totalorder %s46, %s47
    %p56 = scmp.eq.s32.totalorder %s15, 0
    %p57 = por %p55, %p56
    %p58 = scmp.ne.s32.totalorder %s46, %s47
    %p59 = scmp.eq.s32.totalorder %s16, 1
    %p60 = por %p58, %p59
    %p62 = scmp.ne.s32.totalorder %s47, %s61
    %p63 = scmp.eq.s32.totalorder %s16, 0
    %p64 = por %p62, %p63
    %s66 = sadd.s32 %s65, 1
    %p69 = scmp.eq.s32.totalorder %s10, 1
    %p70 = scmp.ne.s32.totalorder %s65, %s67
    %p71 = scmp.eq.s32.totalorder %s10, 0
    %p72 = por %p70, %p71
    %p73 = scmp.ne.s32.totalorder %s65, %s67
    %p74 = scmp.eq.s32.totalorder %s15, 1
    %p75 = por %p73, %p74
    %p76 = scmp.ne.s32.totalorder %s67, %s68
    %p77 = scmp.eq.s32.totalorder %s15, 0
    %p78 = por %p76, %p77
    %p79 = scmp.ne.s32.totalorder %s67, %s68
    %p80 = scmp.eq.s32.totalorder %s16, 1
    %p81 = por %p79, %p80
    %p83 = scmp.ne.s32.totalorder %s68, %s82
    %p84 = scmp.eq.s32.totalorder %s16, 0
    %p85 = por %p83, %p84
    %s87 = sadd.s32 %s86, 1
    %p90 = scmp.eq.s32.totalorder %s10, 1
    %p91 = scmp.ne.s32.totalorder %s86, %s88
    %p92 = scmp.eq.s32.totalorder %s10, 0
    %p93 = por %p91, %p92
    %p94 = scmp.ne.s32.totalorder %s86, %s88
    %p95 = scmp.eq.s32.totalorder %s15, 1
    %p96 = por %p94, %p95
    %p97 = scmp.ne.s32.totalorder %s88, %s89
    %p98 = scmp.eq.s32.totalorder %s15, 0
    %p99 = por %p97, %p98
    %p100 = scmp.ne.s32.totalorder %s88, %s89
    %p101 = scmp.eq.s32.totalorder %s16, 1
    %p102 = por %p100, %p101
    %p104 = scmp.ne.s32.totalorder %s89, %s103
    %p105 = scmp.eq.s32.totalorder %s16, 0
    %p106 = por %p104, %p105
    %s107 = ssub.s32 %s10, %s17
    %p108 = scmp.eq.s32.totalorder %s107, 0
    %s110 = sadd.s32 %s109, 1
    %s111 = scalar_select %p108, %s109, %s110
    %p114 = pneg %p108
    %p115 = scmp.eq.s32.totalorder %s10, 1
    %p116 = por %p114, %p115
    %p117 = scmp.ne.s32.totalorder %s109, %s112
    %p118 = scmp.eq.s32.totalorder %s10, 0
    %p119 = por %p117, %p118
    %p120 = scmp.ne.s32.totalorder %s109, %s112
    %p121 = scmp.eq.s32.totalorder %s15, 1
    %p122 = por %p120, %p121
    %p123 = scmp.ne.s32.totalorder %s112, %s113
    %p124 = scmp.eq.s32.totalorder %s15, 0
    %p125 = por %p123, %p124
    %p126 = scmp.ne.s32.totalorder %s112, %s113
    %p127 = scmp.eq.s32.totalorder %s16, 1
    %p128 = por %p126, %p127
    %p130 = scmp.ne.s32.totalorder %s113, %s129
    %p131 = scmp.eq.s32.totalorder %s16, 0
    %p132 = por %p130, %p131
    %p133 = scmp.le.s32.totalorder 1, %s10
    %p134 = scmp.lt.s32.totalorder %s10, 3
    %p135 = pnand %p133, %p134
    %p136 = pneg %p135
    // Predicated region
    $region9: #{_conv1d_bn_relu.3} parent=5 // pred_check
      _
    $region10: #{_conv1d_bn_relu.3} parent=5 // pred_check_branch
      %138 = sbr.rel (%p135) target = $region12
    $region11: #{_conv1d_bn_relu.3} parent=5 // pred_region
      %s139 = ssub.s32 %s10, 1
      // Predicated region
      $region13: #{_conv1d_bn_relu.3} parent=11 // pred_check
        %p140 = pneg %p57
      $region14: #{_conv1d_bn_relu.3} parent=11 // pred_check_branch
        %142 = sbr.rel (%p140) target = $region16
      $region15: #{_conv1d_bn_relu.3} parent=11 // pred_region
        _
      $region16: #{_conv1d_bn_relu.3} parent=11 // pred_fallthru
        _
      // Predicated region
      $region17: #{_conv1d_bn_relu.3} parent=11 // pred_check
        %p143 = pneg %p78
      $region18: #{_conv1d_bn_relu.3} parent=11 // pred_check_branch
        %145 = sbr.rel (%p143) target = $region20
      $region19: #{_conv1d_bn_relu.3} parent=11 // pred_region
        _
      $region20: #{_conv1d_bn_relu.3} parent=11 // pred_fallthru
        _
      // Predicated region
      $region21: #{_conv1d_bn_relu.3} parent=11 // pred_check
        %p146 = pneg %p99
      $region22: #{_conv1d_bn_relu.3} parent=11 // pred_check_branch
        %148 = sbr.rel (%p146) target = $region24
      $region23: #{_conv1d_bn_relu.3} parent=11 // pred_region
        _
      $region24: #{_conv1d_bn_relu.3} parent=11 // pred_fallthru
        _
    $region12: #{_conv1d_bn_relu.3} parent=5 // pred_fallthru
      _
    %p149 = scmp.lt.s32.totalorder %s10, 2
    // Predicated region
    $region25: #{_conv1d_bn_relu.3} parent=5 // pred_check
      %p150 = pneg %p149
    $region26: #{_conv1d_bn_relu.3} parent=5 // pred_check_branch
      %152 = sbr.rel (%p150) target = $region28
    $region27: #{_conv1d_bn_relu.3} parent=5 // pred_region
      // Predicated region
      $region29: #{_conv1d_bn_relu.3} parent=27 // pred_check
        %p153 = pneg %p30
      $region30: #{_conv1d_bn_relu.3} parent=27 // pred_check_branch
        %155 = sbr.rel (%p153) target = $region32
      $region31: #{_conv1d_bn_relu.3} parent=27 // pred_region
        %s156 = smul.u32 19, %s10
        %p157 = scmp.lt.s32.totalorder %s156, 37
        %s158 = scalar_select %p157, %s156, 37
        %s159 = smul.addr %s158, 4
        %s160 = scalar_lea.vmem %s0, %s159
        %s161 = smul.u32 19, %s10
      $region32: #{_conv1d_bn_relu.3} parent=27 // pred_fallthru
        _
    $region28: #{_conv1d_bn_relu.3} parent=5 // pred_fallthru
      _
    %p162 = scmp.le.s32.totalorder 1, %s10
    %p163 = scmp.lt.s32.totalorder %s10, 3
    %p164 = pnand %p162, %p163
    %p165 = pneg %p164
    // Predicated region
    $region33: #{_conv1d_bn_relu.3} parent=5 // pred_check
      _
    $region34: #{_conv1d_bn_relu.3} parent=5 // pred_check_branch
      %167 = sbr.rel (%p164) target = $region36
    $region35: #{_conv1d_bn_relu.3} parent=5 // pred_region
      %s168 = ssub.s32 %s10, 1
      %s169 = smul.u32 19, %s15
      %p170 = scmp.lt.s32.totalorder %s169, 37
      %s171 = scalar_select %p170, %s169, 37
      %s172 = smul.addr %s171, 4
      %s173 = scalar_lea.vmem %s0, %s172
      %p174 = pneg %p36
      %p175 = pneg %p33
      %p176 = pneg %p57
      %p177 = pneg %p54
      %p178 = pneg %p78
      %p179 = pneg %p75
      %p180 = pneg %p99
      %p181 = pneg %p96
      %p182 = pneg %p125
      %p183 = pneg %p122
      %s184 = smul.u32 19, %s15
      %p185 = scmp.lt.s32.totalorder %s184, 37
      %s186 = scalar_select %p185, %s184, 37
      %s187 = smul.addr %s186, 4
      %s188 = scalar_lea.vmem %s4, %s187
      %s189 = smul.u32 19, %s15
      %p190 = scmp.lt.s32.totalorder %s189, 37
      %s191 = scalar_select %p190, %s189, 37
      %s192 = smul.addr %s191, 4
      %s193 = scalar_lea.vmem %s0, %s192
      %s194 = smul.u32 19, %s15
      %s195 = smul.u32 19, %s15
      %p196 = scmp.lt.s32.totalorder %s195, 37
      %s197 = scalar_select %p196, %s195, 37
      %s198 = smul.addr %s197, 4
      %s199 = scalar_lea.vmem %s4, %s198
      %s200 = smul.u32 19, %s15
      %v202 = vld [vmem:[%s193] sm:$0xf]
      %v203 = vld [vmem:[%s193 + $0x4] sm:$0xf]
      %v204 = vld [vmem:[%s193 + $0x8] sm:$0xf]
      %v205 = vld [vmem:[%s193 + $0xc] sm:$0xf]
      %v206 = vld [vmem:[%s193 + $0x10] sm:$0xf]
      %v207 = vld [vmem:[%s193 + $0x14] sm:$0xf]
      %v208 = vld [vmem:[%s193 + $0x18] sm:$0xf]
      %v209 = vld [vmem:[%s193 + $0x1c] sm:$0xf]
      %v210 = vld [vmem:[%s193 + $0x20] sm:$0xf]
      %v211 = vld [vmem:[%s193 + $0x24] sm:$0xf]
      %v212 = vld [vmem:[%s193 + $0x28] sm:$0xf]
      %v213 = vld [vmem:[%s193 + $0x2c] sm:$0xf]
      %v214 = vld [vmem:[%s193 + $0x30] sm:$0xf]
      %v215 = vld [vmem:[%s193 + $0x34] sm:$0xf]
      %v216 = vld [vmem:[%s193 + $0x38] sm:$0xf]
      %v217 = vld [vmem:[%s193 + $0x3c] sm:$0xf]
      %v218 = vld [vmem:[%s193 + $0x40] sm:$0xf]
      %v219 = vld [vmem:[%s193 + $0x44] sm:$0xf]
      %v220 = vld [vmem:[%s193 + $0x48] sm:$0xf]
      %v221 = vld [vmem:[%s1] sm:$0xf]
      %v222 = vld [vmem:[%s1 + $0x4] sm:$0xf]
      %v223 = vld [vmem:[%s1 + $0x8] sm:$0xf]
      %v224 = vld [vmem:[%s1 + $0xc] sm:$0xf]
      %v225 = vld [vmem:[%s1 + $0x10] sm:$0xf]
      %v226 = vld [vmem:[%s1 + $0x14] sm:$0xf]
      %v246 = vunpack.c.l.b16 %v202
      %v247 = vunpack.c.l.b16 %v203
      %v248 = vunpack.c.l.b16 %v204
      %v249 = vunpack.c.l.b16 %v205
      %v250 = vunpack.c.l.b16 %v206
      %v251 = vunpack.c.l.b16 %v207
      %v252 = vunpack.c.l.b16 %v208
      %v253 = vunpack.c.l.b16 %v209
      %v254 = vunpack.c.l.b16 %v210
      %v255 = vunpack.c.l.b16 %v211
      %v256 = vunpack.c.l.b16 %v212
      %v257 = vunpack.c.l.b16 %v213
      %v258 = vunpack.c.l.b16 %v214
      %v259 = vunpack.c.l.b16 %v215
      %v260 = vunpack.c.l.b16 %v216
      %v261 = vunpack.c.l.b16 %v217
      %v262 = vunpack.c.l.b16 %v218
      %v263 = vunpack.c.l.b16 %v219
      %v264 = vunpack.c.l.b16 %v220
      %v265 = vpack.c.b16 %v247, %v246
      %v266 = vpack.c.b16 %v249, %v248
      %v267 = vpack.c.b16 %v251, %v250
      %v268 = vpack.c.b16 %v253, %v252
      %v269 = vpack.c.b16 %v255, %v254
      %v270 = vpack.c.b16 %v257, %v256
      %v271 = vpack.c.b16 %v259, %v258
      %v272 = vpack.c.b16 %v261, %v260
      %v273 = vpack.c.b16 %v263, %v262
      %v274 = vpack.c.b16 %v264, %v264
      %v281 = vunpack.c.l.b16 %v221
      %v282 = vunpack.c.l.b16 %v222
      %v283 = vunpack.c.l.b16 %v223
      %v284 = vunpack.c.l.b16 %v224
      %v285 = vunpack.c.l.b16 %v225
      %v286 = vunpack.c.l.b16 %v226
      %v287 = vpack.c.b16 %v282, %v281
      %v288 = vpack.c.b16 %v284, %v283
      %v289 = vpack.c.b16 %v286, %v285
      %vm293 = vcmask 392192
      %v295 = vsel %vm293, %v265, 0
      %v298 = vsel %vm293, %v266, 0
      %v301 = vsel %vm293, %v267, 0
      %v304 = vsel %vm293, %v268, 0
      %v307 = vsel %vm293, %v269, 0
      %v310 = vsel %vm293, %v270, 0
      %v313 = vsel %vm293, %v271, 0
      %v316 = vsel %vm293, %v272, 0
      %v319 = vsel %vm293, %v273, 0
      %v322 = vsel %vm293, %v274, 0
      %324 = vmatpush.bf16.msra.mxu0 0
      %325 = vmatpush.bf16.msra.mxu0 0
      %326 = vmatpush.bf16.msra.mxu0 0
      %327 = vmatpush.bf16.msra.mxu0 0
      %328 = vmatpush.bf16.msra.mxu0 0
      %329 = vmatpush.bf16.msra.mxu0 %v289
      %330 = vmatpush.bf16.msra.mxu0 %v288
      %331 = vmatpush.bf16.msra.mxu0 %v287
      %332 = vmatmul.bf16.gmra.mxu0 %v295
      %v333 = vpop.f32.mrf.mxu0
      %v334 = vadd.f32 0.0, %v333
      %v335 = vpop.f32.mrf.mxu0
      %v336 = vadd.f32 0.0, %v335
      %337 = vmatmul.bf16.gmra.mxu0 %v298
      %v338 = vpop.f32.mrf.mxu0
      %v339 = vadd.f32 0.0, %v338
      %v340 = vpop.f32.mrf.mxu0
      %v341 = vadd.f32 0.0, %v340
      %342 = vmatmul.bf16.gmra.mxu0 %v301
      %v343 = vpop.f32.mrf.mxu0
      %v344 = vadd.f32 0.0, %v343
      %v345 = vpop.f32.mrf.mxu0
      %v346 = vadd.f32 0.0, %v345
      %347 = vmatmul.bf16.gmra.mxu0 %v304
      %v348 = vpop.f32.mrf.mxu0
      %v349 = vadd.f32 0.0, %v348
      %v350 = vpop.f32.mrf.mxu0
      %v351 = vadd.f32 0.0, %v350
      %352 = vmatmul.bf16.gmra.mxu0 %v307
      %v353 = vpop.f32.mrf.mxu0
      %v354 = vadd.f32 0.0, %v353
      %v355 = vpop.f32.mrf.mxu0
      %v356 = vadd.f32 0.0, %v355
      %357 = vmatmul.bf16.gmra.mxu0 %v310
      %v358 = vpop.f32.mrf.mxu0
      %v359 = vadd.f32 0.0, %v358
      %v360 = vpop.f32.mrf.mxu0
      %v361 = vadd.f32 0.0, %v360
      %362 = vmatmul.bf16.gmra.mxu0 %v313
      %v363 = vpop.f32.mrf.mxu0
      %v364 = vadd.f32 0.0, %v363
      %v365 = vpop.f32.mrf.mxu0
      %v366 = vadd.f32 0.0, %v365
      %367 = vmatmul.bf16.gmra.mxu0 %v316
      %v368 = vpop.f32.mrf.mxu0
      %v369 = vadd.f32 0.0, %v368
      %v370 = vpop.f32.mrf.mxu0
      %v371 = vadd.f32 0.0, %v370
      %372 = vmatmul.bf16.gmra.mxu0 %v319
      %v373 = vpop.f32.mrf.mxu0
      %v374 = vadd.f32 0.0, %v373
      %v375 = vpop.f32.mrf.mxu0
      %v376 = vadd.f32 0.0, %v375
      %377 = vmatmul.bf16.gmra.mxu0 %v322
      %v378 = vpop.f32.mrf.mxu0
      %v379 = vadd.f32 0.0, %v378
      %v380 = vpop.f32.mrf.mxu0
      %381 = vdwg.mxu0
      %v382 = vld [vmem:[%s2] sm:$0x1]
      %v384 = vperm.slane %v382, 0
      %v386 = vmul.f32 %v334, %v384
      %v387 = vmul.f32 %v336, %v384
      %v388 = vmul.f32 %v339, %v384
      %v389 = vmul.f32 %v341, %v384
      %v390 = vmul.f32 %v344, %v384
      %v391 = vmul.f32 %v346, %v384
      %v392 = vmul.f32 %v349, %v384
      %v393 = vmul.f32 %v351, %v384
      %v394 = vmul.f32 %v354, %v384
      %v395 = vmul.f32 %v356, %v384
      %v396 = vmul.f32 %v359, %v384
      %v397 = vmul.f32 %v361, %v384
      %v398 = vmul.f32 %v364, %v384
      %v399 = vmul.f32 %v366, %v384
      %v400 = vmul.f32 %v369, %v384
      %v401 = vmul.f32 %v371, %v384
      %v402 = vmul.f32 %v374, %v384
      %v403 = vmul.f32 %v376, %v384
      %v404 = vmul.f32 %v379, %v384
      %v405 = vld [vmem:[%s3] sm:$0x1]
      %v407 = vperm.slane %v405, 0
      %v409 = vadd.f32 %v386, %v407
      %v410 = vadd.f32 %v387, %v407
      %v411 = vadd.f32 %v388, %v407
      %v412 = vadd.f32 %v389, %v407
      %v413 = vadd.f32 %v390, %v407
      %v414 = vadd.f32 %v391, %v407
      %v415 = vadd.f32 %v392, %v407
      %v416 = vadd.f32 %v393, %v407
      %v417 = vadd.f32 %v394, %v407
      %v418 = vadd.f32 %v395, %v407
      %v419 = vadd.f32 %v396, %v407
      %v420 = vadd.f32 %v397, %v407
      %v421 = vadd.f32 %v398, %v407
      %v422 = vadd.f32 %v399, %v407
      %v423 = vadd.f32 %v400, %v407
      %v424 = vadd.f32 %v401, %v407
      %v425 = vadd.f32 %v402, %v407
      %v426 = vadd.f32 %v403, %v407
      %v427 = vadd.f32 %v404, %v407
      %v428 = vmax.f32 %v409, 0.0
      %v429 = vmax.f32 %v410, 0.0
      %v430 = vmax.f32 %v411, 0.0
      %v431 = vmax.f32 %v412, 0.0
      %v432 = vmax.f32 %v413, 0.0
      %v433 = vmax.f32 %v414, 0.0
      %v434 = vmax.f32 %v415, 0.0
      %v435 = vmax.f32 %v416, 0.0
      %v436 = vmax.f32 %v417, 0.0
      %v437 = vmax.f32 %v418, 0.0
      %v438 = vmax.f32 %v419, 0.0
      %v439 = vmax.f32 %v420, 0.0
      %v440 = vmax.f32 %v421, 0.0
      %v441 = vmax.f32 %v422, 0.0
      %v442 = vmax.f32 %v423, 0.0
      %v443 = vmax.f32 %v424, 0.0
      %v444 = vmax.f32 %v425, 0.0
      %v445 = vmax.f32 %v426, 0.0
      %v446 = vmax.f32 %v427, 0.0
      %v447 = vpack.c.bf16 %v428, %v428
      %v448 = vpack.c.bf16 %v429, %v429
      %v449 = vpack.c.bf16 %v430, %v430
      %v450 = vpack.c.bf16 %v431, %v431
      %v451 = vpack.c.bf16 %v432, %v432
      %v452 = vpack.c.bf16 %v433, %v433
      %v453 = vpack.c.bf16 %v434, %v434
      %v454 = vpack.c.bf16 %v435, %v435
      %v455 = vpack.c.bf16 %v436, %v436
      %v456 = vpack.c.bf16 %v437, %v437
      %v457 = vpack.c.bf16 %v438, %v438
      %v458 = vpack.c.bf16 %v439, %v439
      %v459 = vpack.c.bf16 %v440, %v440
      %v460 = vpack.c.bf16 %v441, %v441
      %v461 = vpack.c.bf16 %v442, %v442
      %v462 = vpack.c.bf16 %v443, %v443
      %v463 = vpack.c.bf16 %v444, %v444
      %v464 = vpack.c.bf16 %v445, %v445
      %v465 = vpack.c.bf16 %v446, %v446
      %466 = vst [vmem:[%s199] sm:$0xf] %v447
      %467 = vst [vmem:[%s199 + $0x4] sm:$0xf] %v448
      %468 = vst [vmem:[%s199 + $0x8] sm:$0xf] %v449
      %469 = vst [vmem:[%s199 + $0xc] sm:$0xf] %v450
      %470 = vst [vmem:[%s199 + $0x10] sm:$0xf] %v451
      %471 = vst [vmem:[%s199 + $0x14] sm:$0xf] %v452
      %472 = vst [vmem:[%s199 + $0x18] sm:$0xf] %v453
      %473 = vst [vmem:[%s199 + $0x1c] sm:$0xf] %v454
      %474 = vst [vmem:[%s199 + $0x20] sm:$0xf] %v455
      %475 = vst [vmem:[%s199 + $0x24] sm:$0xf] %v456
      %476 = vst [vmem:[%s199 + $0x28] sm:$0xf] %v457
      %477 = vst [vmem:[%s199 + $0x2c] sm:$0xf] %v458
      %478 = vst [vmem:[%s199 + $0x30] sm:$0xf] %v459
      %479 = vst [vmem:[%s199 + $0x34] sm:$0xf] %v460
      %480 = vst [vmem:[%s199 + $0x38] sm:$0xf] %v461
      %481 = vst [vmem:[%s199 + $0x3c] sm:$0xf] %v462
      %482 = vst [vmem:[%s199 + $0x40] sm:$0xf] %v463
      %483 = vst [vmem:[%s199 + $0x44] sm:$0xf] %v464
      %484 = vst [vmem:[%s199 + $0x48] sm:$0xf] %v465
      %s485 = smul.u32 19, %s15
      %p486 = scmp.lt.s32.totalorder %s485, 37
      %s487 = scalar_select %p486, %s485, 37
      %s488 = smul.addr %s487, 4
      %s489 = scalar_lea.vmem %s4, %s488
      // Predicated region
      $region37: #{_conv1d_bn_relu.3} parent=35 // pred_check
        %p490 = pneg %p122
      $region38: #{_conv1d_bn_relu.3} parent=35 // pred_check_branch
        %492 = sbr.rel (%p490) target = $region40
      $region39: #{_conv1d_bn_relu.3} parent=35 // pred_region
        %s493 = smul.u32 19, %s15
      $region40: #{_conv1d_bn_relu.3} parent=35 // pred_fallthru
        _
    $region36: #{_conv1d_bn_relu.3} parent=5 // pred_fallthru
      _
    %p494 = scmp.le.s32.totalorder 2, %s10
    // Predicated region
    $region41: #{_conv1d_bn_relu.3} parent=5 // pred_check
      %p495 = pneg %p494
    $region42: #{_conv1d_bn_relu.3} parent=5 // pred_check_branch
      %497 = sbr.rel (%p495) target = $region44
    $region43: #{_conv1d_bn_relu.3} parent=5 // pred_region
      %s498 = ssub.s32 %s10, 2
      // Predicated region
      $region45: #{_conv1d_bn_relu.3} parent=43 // pred_check
        %p499 = pneg %p128
      $region46: #{_conv1d_bn_relu.3} parent=43 // pred_check_branch
        %501 = sbr.rel (%p499) target = $region48
      $region47: #{_conv1d_bn_relu.3} parent=43 // pred_region
        %s502 = smul.u32 19, %s16
        %p503 = scmp.lt.s32.totalorder %s502, 37
        %s504 = scalar_select %p503, %s502, 37
        %s505 = smul.addr %s504, 4
        %s506 = scalar_lea.vmem %s4, %s505
      $region48: #{_conv1d_bn_relu.3} parent=43 // pred_fallthru
        _
    $region44: #{_conv1d_bn_relu.3} parent=5 // pred_fallthru
      _
  $region6: #{_conv1d_bn_relu.3} parent=0 // loop_footer
    %s14 = sadd.s32 1, %s10
  $region7: #{_conv1d_bn_relu.3} parent=0 // loop_footer_branch
    %9 = sbr.rel target = $region3
  $region8: #{_conv1d_bn_relu.3} parent=0 // loop_exit
    _

</llo_original>
